<compile_context>
chip_gen: v5e
topology: v5e:2x2
jax: 0.10.0
libtpu: 0.0.40
codegen_flags: <defaults>
</compile_context>

<pallas_src>
import jax
import jax.numpy as jnp
from jax.experimental import pallas as pl
from jax.experimental.pallas import tpu as pltpu

LANE = 128


def _round_up(n, m):
    return ((n + m - 1) // m) * m


# ---------------------------------------------------------------------------
# Fused kernel: mGRU cell over the (TB, S) tile + ReLU -> FC -> log-softmax
# head on the last timestep of each batch row.
# ---------------------------------------------------------------------------
def grunet_kernel(x_ref, h_ref, wpx_ref, wph_ref, bg_ref,
                  w2h_ref, wfc_ref, bfc_ref, hout_ref, fout_ref):
    TB, S, I = x_ref.shape
    H = h_ref.shape[-1]
    O = fout_ref.shape[-1]
    N = TB * S

    xb = x_ref[...].reshape(N, I)            # f32 (N, I)
    hb = h_ref[...].reshape(N, H)            # f32 (N, H)

    # Packed gate matmul: cat(x, h) @ [[w1x, w2x], [w1h, 0]] computed without
    # materializing the concat.  Result (N, 2H) = [z1 | z2_x] (+ both biases).
    z = (jnp.dot(xb, wpx_ref[...], preferred_element_type=jnp.float32)
         + jnp.dot(hb, wph_ref[...], preferred_element_type=jnp.float32)
         + bg_ref[...])
    z1 = z[:, :H]                            # gate-1 pre-activation (incl. b1)
    z2x = z[:, H:]                           # x-contribution of gate-2 (incl. b2)

    forget = jax.nn.sigmoid(z1)              # f32 (N, H)
    interim_h = forget * hb
    z2 = z2x + jnp.dot(interim_h, w2h_ref[...], preferred_element_type=jnp.float32)
    interim_o = jnp.tanh(z2)

    out = (1.0 - forget) * hb + forget * interim_o        # (N, H) f32
    out3 = out.reshape(TB, S, H)
    hout_ref[...] = out3                                  # logical bytes only

    # --- fused head on the last timestep: ReLU -> FC -> log-softmax ---------
    o_last = jnp.maximum(out3[:, S - 1, :], 0.0)          # (TB, H)
    logits = (jnp.dot(o_last, wfc_ref[...], preferred_element_type=jnp.float32)
              + bfc_ref[...])                             # (TB, O)
    m = jnp.max(logits, axis=1, keepdims=True)
    shifted = logits - m
    lse = jnp.log(jnp.sum(jnp.exp(shifted), axis=1, keepdims=True))
    fout_ref[...] = (shifted - lse).reshape(TB, 1, O)


# ---------------------------------------------------------------------------
# Batch-tile sizing: count double-buffered I/O blocks AND in-kernel f32
# temporaries (with vreg 128-lane padding); cap so grid >= 2 and TB | B.
# ---------------------------------------------------------------------------
def _choose_tb(B, S, I, H, budget_bytes=8 * 1024 * 1024):
    Il = _round_up(max(I, 1), LANE)
    Hl = _round_up(max(H, 1), LANE)
    io_bytes = 2 * S * 4 * (Il + 2 * Hl)          # double-buffered x, h in / h_new out
    tmp_bytes = S * 4 * (Il + 8 * Hl)             # xb, hb, z(2H), forget, ih, z2, io, out
    per_row = max(io_bytes + tmp_bytes, 1)
    cap = max(1, budget_bytes // per_row)
    if B >= 2:
        cap = min(cap, B // 2)                    # grid >= 2: megacore + pipelining
    cap = max(1, min(cap, B))
    tb = 1
    for d in range(1, cap + 1):                   # largest divisor of B <= cap
        if B % d == 0:
            tb = d
    return tb


# ---------------------------------------------------------------------------
# Wrapper
# ---------------------------------------------------------------------------
def grunet_forward(x, h, params):
    """x: (B, S, I) f32, h: (B, S, H) f32 -> (fout (B, O) f32, h_new (B, S, H) f32)."""
    x = jnp.asarray(x, jnp.float32)
    h = jnp.asarray(h, jnp.float32)
    B, S, I = x.shape
    H = h.shape[-1]
    O = params["output_size"]

    TB = _choose_tb(B, S, I, H)
    grid = (B // TB,)

    h_new, fout3 = pl.pallas_call(
        grunet_kernel,
        out_shape=(jax.ShapeDtypeStruct((B, S, H), jnp.float32),
                   jax.ShapeDtypeStruct((B, 1, O), jnp.float32)),
        grid=grid,
        in_specs=(
            pl.BlockSpec((TB, S, I), lambda b: (b, 0, 0)),     # x tile (unpadded f32)
            pl.BlockSpec((TB, S, H), lambda b: (b, 0, 0)),     # h tile (unpadded f32)
            pl.BlockSpec((I, 2 * H), lambda b: (0, 0)),        # packed gate W, x rows (resident)
            pl.BlockSpec((H, 2 * H), lambda b: (0, 0)),        # packed gate W, h rows (resident)
            pl.BlockSpec((1, 2 * H), lambda b: (0, 0)),        # packed gate bias      (resident)
            pl.BlockSpec((H, H), lambda b: (0, 0)),            # w2h                   (resident)
            pl.BlockSpec((H, O), lambda b: (0, 0)),            # w_fc                  (resident)
            pl.BlockSpec((1, O), lambda b: (0, 0)),            # b_fc                  (resident)
        ),
        out_specs=(
            pl.BlockSpec((TB, S, H), lambda b: (b, 0, 0)),     # h_new, logical shape
            pl.BlockSpec((TB, 1, O), lambda b: (b, 0, 0)),     # fout,  logical shape
        ),
        compiler_params=pltpu.CompilerParams(
            dimension_semantics=("parallel",),                 # megacore-shard batch tiles
            vmem_limit_bytes=48 * 1024 * 1024,                 # within v7x 64 MiB physical
        ),
    )(x, h, params["w_pack_x"], params["w_pack_h"], params["b_pack"],
      params["w2h"], params["w_fc"], params["b_fc"])

    return fout3.reshape(B, O), h_new                          # reshape is a free bitcast


def init_params(key, input_size, hidden_size, output_size):
    """PyTorch-style uniform init. Returns (packed kernel params, raw params)."""
    I, H, O = input_size, hidden_size, output_size
    IH = I + H
    k = jax.random.split(key, 6)

    def unif(kk, shape, fan_in):
        bound = float(fan_in) ** -0.5
        return jax.random.uniform(kk, shape, jnp.float32, -bound, bound)

    raw = {
        "W1": unif(k[0], (H, IH), IH),   # nn.Linear(I+H, H).weight
        "b1": unif(k[1], (H,), IH),
        "W2": unif(k[2], (H, IH), IH),
        "b2": unif(k[3], (H,), IH),
        "Wfc": unif(k[4], (O, H), H),    # nn.Linear(H, O).weight
        "bfc": unif(k[5], (O,), H),
    }

    w1x = raw["W1"][:, :I].T             # (I, H)
    w1h = raw["W1"][:, I:].T             # (H, H)
    w2x = raw["W2"][:, :I].T             # (I, H)
    w2h = raw["W2"][:, I:].T             # (H, H)

    params = {
        # Packed gate weight: cat(x, h) @ [[w1x, w2x], [w1h, 0]] -> [z1 | z2_x].
        "w_pack_x": jnp.concatenate([w1x, w2x], axis=1),                   # (I, 2H) f32
        "w_pack_h": jnp.concatenate([w1h, jnp.zeros_like(w1h)], axis=1),   # (H, 2H) f32
        "b_pack": jnp.concatenate([raw["b1"], raw["b2"]])[None, :],        # (1, 2H) f32
        "w2h": w2h,                                                        # (H, H)  f32
        "w_fc": raw["Wfc"].T,                                              # (H, O)  f32
        "b_fc": raw["bfc"][None, :],                                       # (1, O)  f32
        "input_size": I, "hidden_size": H, "output_size": O,
    }
    return params, raw


def ref_forward(x, h, raw):
    """Pure-f32 JAX reference mirroring the PyTorch module exactly."""
    comb1 = jnp.concatenate([x, h], axis=2)
    forget = jax.nn.sigmoid(jnp.einsum("bsk,hk->bsh", comb1, raw["W1"]) + raw["b1"])
    interim_h = forget * h
    comb2 = jnp.concatenate([x, interim_h], axis=2)
    interim_o = jnp.tanh(jnp.einsum("bsk,hk->bsh", comb2, raw["W2"]) + raw["b2"])
    out = (1.0 - forget) * h + forget * interim_o
    logits = jnp.maximum(out[:, -1], 0.0) @ raw["Wfc"].T + raw["bfc"]
    return jax.nn.log_softmax(logits, axis=1), out


if __name__ == "__main__":
    B, S = 2, 8
    INPUT_SIZE, HIDDEN_SIZE, OUTPUT_SIZE = 16, 32, 10

    key = jax.random.PRNGKey(0)
    k_x, k_h, k_p = jax.random.split(key, 3)

    x = jax.random.normal(k_x, (B, S, INPUT_SIZE), jnp.float32)
    h = jax.random.normal(k_h, (B, S, HIDDEN_SIZE), jnp.float32)
    params, raw = init_params(k_p, INPUT_SIZE, HIDDEN_SIZE, OUTPUT_SIZE)

    fout, h_new = grunet_forward(x, h, params)
    jax.block_until_ready((fout, h_new))

    assert fout.shape == (B, OUTPUT_SIZE)
    assert h_new.shape == (B, S, HIDDEN_SIZE)

    fout_ref, h_new_ref = ref_forward(x, h, raw)
    # Everything is f32 end-to-end; remaining diffs are MXU accumulation
    # order / default matmul precision.
    assert jnp.allclose(fout, fout_ref, atol=2e-2, rtol=2e-2), \
        float(jnp.max(jnp.abs(fout - fout_ref)))
    assert jnp.allclose(h_new, h_new_ref, atol=2e-2, rtol=2e-2), \
        float(jnp.max(jnp.abs(h_new - h_new_ref)))

    print("KERNEL_OK")
</pallas_src>

<mosaic_0001>
module attributes {stable_mosaic.version = 11 : i64} {
  func.func @grunet_kernel(%arg0: i32, %arg1: memref<1x8x16xf32, #tpu.memory_space<vmem>>, %arg2: memref<1x8x32xf32, #tpu.memory_space<vmem>>, %arg3: memref<16x64xf32, #tpu.memory_space<vmem>>, %arg4: memref<32x64xf32, #tpu.memory_space<vmem>>, %arg5: memref<1x64xf32, #tpu.memory_space<vmem>>, %arg6: memref<32x32xf32, #tpu.memory_space<vmem>>, %arg7: memref<32x10xf32, #tpu.memory_space<vmem>>, %arg8: memref<1x10xf32, #tpu.memory_space<vmem>>, %arg9: memref<1x8x32xf32, #tpu.memory_space<vmem>>, %arg10: memref<1x1x10xf32, #tpu.memory_space<vmem>>) attributes {dimension_semantics = [#tpu.dimension_semantics<parallel>], iteration_bounds = array<i64: 2>, scalar_prefetch = 0 : i64, scratch_operands = 0 : i64, tpu.core_type = #tpu.core_type<tc>, window_params = [{transform_indices = @transform_0, window_bounds = array<i64: 1, 8, 16>}, {transform_indices = @transform_1, window_bounds = array<i64: 1, 8, 32>}, {pipeline_mode = #tpu.pipeline_mode<synchronous>, transform_indices = @transform_2, window_bounds = array<i64: 16, 64>}, {pipeline_mode = #tpu.pipeline_mode<synchronous>, transform_indices = @transform_3, window_bounds = array<i64: 32, 64>}, {pipeline_mode = #tpu.pipeline_mode<synchronous>, transform_indices = @transform_4, window_bounds = array<i64: 1, 64>}, {pipeline_mode = #tpu.pipeline_mode<synchronous>, transform_indices = @transform_5, window_bounds = array<i64: 32, 32>}, {pipeline_mode = #tpu.pipeline_mode<synchronous>, transform_indices = @transform_6, window_bounds = array<i64: 32, 10>}, {pipeline_mode = #tpu.pipeline_mode<synchronous>, transform_indices = @transform_7, window_bounds = array<i64: 1, 10>}, {transform_indices = @transform_8, window_bounds = array<i64: 1, 8, 32>}, {transform_indices = @transform_9, window_bounds = array<i64: 1, 1, 10>}]} {
    %c0 = arith.constant 0 : index
    %c0_0 = arith.constant 0 : index
    %c0_1 = arith.constant 0 : index
    %0 = vector.load %arg1[%c0, %c0_0, %c0_1] : memref<1x8x16xf32, #tpu.memory_space<vmem>>, vector<1x8x16xf32>
    %1 = vector.shape_cast %0 : vector<1x8x16xf32> to vector<8x16xf32>
    %c0_2 = arith.constant 0 : index
    %c0_3 = arith.constant 0 : index
    %c0_4 = arith.constant 0 : index
    %2 = vector.load %arg2[%c0_2, %c0_3, %c0_4] : memref<1x8x32xf32, #tpu.memory_space<vmem>>, vector<1x8x32xf32>
    %3 = vector.shape_cast %2 : vector<1x8x32xf32> to vector<8x32xf32>
    %c0_5 = arith.constant 0 : index
    %c0_6 = arith.constant 0 : index
    %4 = vector.load %arg3[%c0_5, %c0_6] : memref<16x64xf32, #tpu.memory_space<vmem>>, vector<16x64xf32>
    %cst = arith.constant dense<0.000000e+00> : vector<8x64xf32>
    %5 = tpu.matmul %1, %4, %cst {dimension_numbers = #tpu.dot_dimension_numbers<[1], [0], [0], [1], [0, 0, 1, 1], [], []>} : vector<8x16xf32>, vector<16x64xf32>, vector<8x64xf32> -> vector<8x64xf32>
    %c0_7 = arith.constant 0 : index
    %c0_8 = arith.constant 0 : index
    %6 = vector.load %arg4[%c0_7, %c0_8] : memref<32x64xf32, #tpu.memory_space<vmem>>, vector<32x64xf32>
    %cst_9 = arith.constant dense<0.000000e+00> : vector<8x64xf32>
    %7 = tpu.matmul %3, %6, %cst_9 {dimension_numbers = #tpu.dot_dimension_numbers<[1], [0], [0], [1], [0, 0, 1, 1], [], []>} : vector<8x32xf32>, vector<32x64xf32>, vector<8x64xf32> -> vector<8x64xf32>
    %8 = arith.addf %5, %7 : vector<8x64xf32>
    %c0_10 = arith.constant 0 : index
    %c0_11 = arith.constant 0 : index
    %9 = vector.load %arg5[%c0_10, %c0_11] : memref<1x64xf32, #tpu.memory_space<vmem>>, vector<1x64xf32>
    %10 = vector.broadcast %9 : vector<1x64xf32> to vector<8x64xf32>
    %11 = arith.addf %8, %10 : vector<8x64xf32>
    %12 = vector.extract_strided_slice %11 {offsets = [0, 0], sizes = [8, 32], strides = [1, 1]} : vector<8x64xf32> to vector<8x32xf32>
    %13 = vector.extract_strided_slice %11 {offsets = [0, 32], sizes = [8, 32], strides = [1, 1]} : vector<8x64xf32> to vector<8x32xf32>
    %14 = arith.negf %12 : vector<8x32xf32>
    %15 = math.exp %14 : vector<8x32xf32>
    %cst_12 = arith.constant 1.000000e+00 : f32
    %16 = vector.broadcast %cst_12 : f32 to vector<8x32xf32>
    %17 = arith.addf %16, %15 : vector<8x32xf32>
    %18 = arith.divf %16, %17 : vector<8x32xf32>
    %19 = arith.mulf %18, %3 : vector<8x32xf32>
    %c0_13 = arith.constant 0 : index
    %c0_14 = arith.constant 0 : index
    %20 = vector.load %arg6[%c0_13, %c0_14] : memref<32x32xf32, #tpu.memory_space<vmem>>, vector<32x32xf32>
    %cst_15 = arith.constant dense<0.000000e+00> : vector<8x32xf32>
    %21 = tpu.matmul %19, %20, %cst_15 {dimension_numbers = #tpu.dot_dimension_numbers<[1], [0], [0], [1], [0, 0, 1, 1], [], []>} : vector<8x32xf32>, vector<32x32xf32>, vector<8x32xf32> -> vector<8x32xf32>
    %22 = arith.addf %13, %21 : vector<8x32xf32>
    %23 = math.tanh %22 : vector<8x32xf32>
    %cst_16 = arith.constant 1.000000e+00 : f32
    %24 = vector.broadcast %cst_16 : f32 to vector<8x32xf32>
    %25 = arith.subf %24, %18 : vector<8x32xf32>
    %26 = arith.mulf %25, %3 : vector<8x32xf32>
    %27 = arith.mulf %18, %23 : vector<8x32xf32>
    %28 = arith.addf %26, %27 : vector<8x32xf32>
    %29 = vector.shape_cast %28 : vector<8x32xf32> to vector<1x8x32xf32>
    %c0_17 = arith.constant 0 : index
    %c0_18 = arith.constant 0 : index
    %c0_19 = arith.constant 0 : index
    %30 = vector.load %arg9[%c0_17, %c0_18, %c0_19] : memref<1x8x32xf32, #tpu.memory_space<vmem>>, vector<1x8x32xf32>
    tpu.vector_store %arg9[%c0_17, %c0_18, %c0_19], %29 {strides = array<i32>} : memref<1x8x32xf32, #tpu.memory_space<vmem>>, vector<1x8x32xf32>,
    %31 = vector.extract_strided_slice %29 {offsets = [0, 7, 0], sizes = [1, 1, 32], strides = [1, 1, 1]} : vector<1x8x32xf32> to vector<1x1x32xf32>
    %32 = vector.shape_cast %31 : vector<1x1x32xf32> to vector<1x32xf32>
    %cst_20 = arith.constant 0.000000e+00 : f32
    %33 = vector.broadcast %cst_20 : f32 to vector<1x32xf32>
    %34 = arith.maximumf %32, %33 : vector<1x32xf32>
    %c0_21 = arith.constant 0 : index
    %c0_22 = arith.constant 0 : index
    %35 = vector.load %arg7[%c0_21, %c0_22] : memref<32x10xf32, #tpu.memory_space<vmem>>, vector<32x10xf32>
    %cst_23 = arith.constant dense<0.000000e+00> : vector<1x10xf32>
    %36 = tpu.matmul %34, %35, %cst_23 {dimension_numbers = #tpu.dot_dimension_numbers<[1], [0], [0], [1], [0, 0, 1, 1], [], []>} : vector<1x32xf32>, vector<32x10xf32>, vector<1x10xf32> -> vector<1x10xf32>
    %c0_24 = arith.constant 0 : index
    %c0_25 = arith.constant 0 : index
    %37 = vector.load %arg8[%c0_24, %c0_25] : memref<1x10xf32, #tpu.memory_space<vmem>>, vector<1x10xf32>
    %38 = arith.addf %36, %37 : vector<1x10xf32>
    %cst_26 = arith.constant dense<0xFF800000> : vector<1xf32>
    %39 = vector.multi_reduction <maximumf>, %38, %cst_26 [1] : vector<1x10xf32> to vector<1xf32>
    %40 = vector.shape_cast %39 : vector<1xf32> to vector<1x1xf32>
    %41 = vector.broadcast %40 : vector<1x1xf32> to vector<1x10xf32>
    %42 = arith.subf %38, %41 : vector<1x10xf32>
    %43 = math.exp %42 : vector<1x10xf32>
    %cst_27 = arith.constant dense<0.000000e+00> : vector<1xf32>
    %44 = vector.multi_reduction <add>, %43, %cst_27 [1] : vector<1x10xf32> to vector<1xf32>
    %45 = vector.shape_cast %44 : vector<1xf32> to vector<1x1xf32>
    %46 = math.log %45 : vector<1x1xf32>
    %47 = vector.broadcast %46 : vector<1x1xf32> to vector<1x10xf32>
    %48 = arith.subf %42, %47 : vector<1x10xf32>
    %49 = vector.shape_cast %48 : vector<1x10xf32> to vector<1x1x10xf32>
    %c0_28 = arith.constant 0 : index
    %c0_29 = arith.constant 0 : index
    %c0_30 = arith.constant 0 : index
    %50 = vector.load %arg10[%c0_28, %c0_29, %c0_30] : memref<1x1x10xf32, #tpu.memory_space<vmem>>, vector<1x1x10xf32>
    tpu.vector_store %arg10[%c0_28, %c0_29, %c0_30], %49 {strides = array<i32>} : memref<1x1x10xf32, #tpu.memory_space<vmem>>, vector<1x1x10xf32>,
    return
  }
  func.func @transform_0(%arg0: i32) -> (i32, i32, i32) {
    %c0_i32 = arith.constant 0 : i32
    %c0_i32_0 = arith.constant 0 : i32
    %c0_i32_1 = arith.constant 0 : i32
    return %arg0, %c0_i32, %c0_i32_0 : i32, i32, i32
  }
  func.func @transform_1(%arg0: i32) -> (i32, i32, i32) {
    %c0_i32 = arith.constant 0 : i32
    %c0_i32_0 = arith.constant 0 : i32
    %c0_i32_1 = arith.constant 0 : i32
    return %arg0, %c0_i32, %c0_i32_0 : i32, i32, i32
  }
  func.func @transform_2(%arg0: i32) -> (i32, i32) {
    %c0_i32 = arith.constant 0 : i32
    %c0_i32_0 = arith.constant 0 : i32
    %c0_i32_1 = arith.constant 0 : i32
    return %c0_i32, %c0_i32_0 : i32, i32
  }
  func.func @transform_3(%arg0: i32) -> (i32, i32) {
    %c0_i32 = arith.constant 0 : i32
    %c0_i32_0 = arith.constant 0 : i32
    %c0_i32_1 = arith.constant 0 : i32
    return %c0_i32, %c0_i32_0 : i32, i32
  }
  func.func @transform_4(%arg0: i32) -> (i32, i32) {
    %c0_i32 = arith.constant 0 : i32
    %c0_i32_0 = arith.constant 0 : i32
    %c0_i32_1 = arith.constant 0 : i32
    return %c0_i32, %c0_i32_0 : i32, i32
  }
  func.func @transform_5(%arg0: i32) -> (i32, i32) {
    %c0_i32 = arith.constant 0 : i32
    %c0_i32_0 = arith.constant 0 : i32
    %c0_i32_1 = arith.constant 0 : i32
    return %c0_i32, %c0_i32_0 : i32, i32
  }
  func.func @transform_6(%arg0: i32) -> (i32, i32) {
    %c0_i32 = arith.constant 0 : i32
    %c0_i32_0 = arith.constant 0 : i32
    %c0_i32_1 = arith.constant 0 : i32
    return %c0_i32, %c0_i32_0 : i32, i32
  }
  func.func @transform_7(%arg0: i32) -> (i32, i32) {
    %c0_i32 = arith.constant 0 : i32
    %c0_i32_0 = arith.constant 0 : i32
    %c0_i32_1 = arith.constant 0 : i32
    return %c0_i32, %c0_i32_0 : i32, i32
  }
  func.func @transform_8(%arg0: i32) -> (i32, i32, i32) {
    %c0_i32 = arith.constant 0 : i32
    %c0_i32_0 = arith.constant 0 : i32
    %c0_i32_1 = arith.constant 0 : i32
    return %arg0, %c0_i32, %c0_i32_0 : i32, i32, i32
  }
  func.func @transform_9(%arg0: i32) -> (i32, i32, i32) {
    %c0_i32 = arith.constant 0 : i32
    %c0_i32_0 = arith.constant 0 : i32
    %c0_i32_1 = arith.constant 0 : i32
    return %arg0, %c0_i32, %c0_i32_0 : i32, i32, i32
  }
}

</mosaic_0001>

<llo_original>
// kernel: tpu_custom_call.1
$region0: #{tpu_custom_call.1}
  #allocation0 [shape = 'u32[]', space=smem, size = 0x4, offset = 0x4, fixed_abs, tag = 'smem constant byte address 0x4 - core index']
  #allocation1 [shape = 'u32[72,128]{1,0:T(1,128)}', space=vmem, size = 0x9000, scoped, tag = 'internal scratch']
  %s0 = inlined_call_operand.vmem [shape: f32[2,8,16], index: 0, kind: input, shape index: {}]
  %s1 = inlined_call_operand.hbm [shape: f32[2,8,32], index: 1, kind: input, shape index: {}]
  %s2 = inlined_call_operand.hbm [shape: f32[16,64], index: 2, kind: input, shape index: {}]
  %s3 = inlined_call_operand.vmem [shape: f32[32,64], index: 3, kind: input, shape index: {}]
  %s4 = inlined_call_operand.vmem [shape: f32[1,64], index: 4, kind: input, shape index: {}]
  %s5 = inlined_call_operand.hbm [shape: f32[32,32], index: 5, kind: input, shape index: {}]
  %s6 = inlined_call_operand.vmem [shape: f32[32,10], index: 6, kind: input, shape index: {}]
  %s7 = inlined_call_operand.vmem [shape: f32[1,10], index: 7, kind: input, shape index: {}]
  %s8 = inlined_call_operand.hbm [shape: f32[2,8,32], index: 8, kind: output, shape index: {0}]
  %s9 = inlined_call_operand.hbm [shape: f32[2,1,10], index: 9, kind: output, shape index: {1}]
  %10 = xla_tuple %s8, %s9
  %s11 = sld [smem:[#allocation0]]
  $region85: #{tpu_custom_call.1} parent=0
    _
  %s13 = ssub.s32 1, %s11
  %s14 = scalar_select 0, %s13, %s11
  $region1: #{tpu_custom_call.1} parent=0
    #allocation2 [shape = 'u8[8192]{0}', space=vmem, size = 0x2000, scoped, tag = 'input window, operand 1']
    #allocation3 [shape = 's32[2]{0}', space=sflag, size = 0x8, scoped, tag = 'scoped memory for tpu_custom_call.1']
    #allocation4 [shape = 's32[2]{0}', space=sflag, size = 0x8, scoped, tag = 'scoped memory for tpu_custom_call.1']
    #allocation5 [shape = 'u8[8192]{0}', space=vmem, size = 0x2000, scoped, tag = 'input window, operand 2, single buffered']
    #allocation6 [shape = 's32[1]{0}', space=sflag, size = 0x4, scoped, tag = 'scoped memory for tpu_custom_call.1']
    #allocation7 [shape = 'u8[16384]{0}', space=vmem, size = 0x4000, scoped, tag = 'input window, operand 5, single buffered']
    #allocation8 [shape = 'u8[8192]{0}', space=vmem, size = 0x2000, scoped, tag = 'output window, operand 0']
    #allocation9 [shape = 'u8[1024]{0}', space=vmem, size = 0x400, scoped, tag = 'output window, operand 1']
    #allocation10 [shape = 's32[2]{0}', space=sflag, size = 0x8, scoped, tag = 'scoped memory for tpu_custom_call.1']
    %15 = vsyncpa [#allocation3], 0
    %s16 = scalar_lea.sflag [#allocation3], 1
    %17 = vsyncpa %s16, 0
    %18 = vsyncpa [#allocation6], 0
    %19 = vsyncpa [#allocation4], 0
    %s20 = scalar_lea.sflag [#allocation4], 1
    %21 = vsyncpa %s20, 0
    %22 = vsyncpa [#allocation10], 0
    %s23 = scalar_lea.sflag [#allocation10], 1
    %24 = vsyncpa %s23, 0
    loop: start=0, step=1, limit=4
    $region2: #{tpu_custom_call.1} parent=1 // loop_pre_header
      _
    $region3: #{tpu_custom_call.1} parent=1 // loop_header
      %s26 = sphi 0, %s30
      %p27 = scmp.ge.s32.totalorder %s26, 4
      %s36 = sphi 0, %s38
      %s39 = sphi 0, %s36
      %s40 = sphi 0, %s39
      %s56 = sphi 0, %s40
      %s62 = sphi 0, %s64
      %s65 = sphi 0, %s62
      %s66 = sphi 0, %s65
      %s82 = sphi 0, %s66
      %s86 = sphi 0, %s86
      %s88 = sphi 0, %s86
      %s89 = sphi 0, %s88
      %s103 = sphi 0, %s89
      %s107 = sphi 0, %s107
      %s109 = sphi 0, %s107
      %s110 = sphi 0, %s109
      %s124 = sphi 0, %s110
      %s128 = sphi 0, %s128
      %s130 = sphi 0, %s128
      %s131 = sphi 0, %s130
      %s145 = sphi 0, %s131
      %s149 = sphi 0, %s149
      %s151 = sphi 0, %s149
      %s152 = sphi 0, %s151
      %s166 = sphi 0, %s152
      %s170 = sphi 0, %s170
      %s172 = sphi 0, %s170
      %s173 = sphi 0, %s172
      %s187 = sphi 0, %s173
      %s191 = sphi 0, %s191
      %s193 = sphi 0, %s191
      %s194 = sphi 0, %s193
      %s208 = sphi 0, %s194
      %s214 = sphi 0, %s216
      %s217 = sphi 0, %s214
      %s218 = sphi 0, %s217
      %s234 = sphi 0, %s218
      %s240 = sphi 0, %s242
      %s243 = sphi 0, %s240
      %s244 = sphi 0, %s243
      %s260 = sphi 0, %s244
    $region4: #{tpu_custom_call.1} parent=1 // loop_header_branch
      %29 = sbr.rel (%p27) target = $region8
    $region5: #{tpu_custom_call.1} parent=1 // loop_body
      %s31 = ssub.s32 %s26, 1
      %s32 = ssub.s32 %s26, 2
      %s33 = sadd.s32 %s26, 1
      %s34 = ssub.s32 %s26, %s33
      %p35 = scmp.eq.s32.totalorder %s34, 0
      %s37 = sadd.s32 %s36, 1
      %s38 = scalar_select %p35, %s36, %s37
      %p41 = pneg %p35
      %p42 = scmp.eq.s32.totalorder %s26, 1
      %p43 = por %p41, %p42
      %p44 = scmp.ne.s32.totalorder %s36, %s39
      %p45 = scmp.eq.s32.totalorder %s26, 0
      %p46 = por %p44, %p45
      %p47 = scmp.ne.s32.totalorder %s36, %s39
      %p48 = scmp.eq.s32.totalorder %s31, 1
      %p49 = por %p47, %p48
      %p50 = scmp.ne.s32.totalorder %s39, %s40
      %p51 = scmp.eq.s32.totalorder %s31, 0
      %p52 = por %p50, %p51
      %p53 = scmp.ne.s32.totalorder %s39, %s40
      %p54 = scmp.eq.s32.totalorder %s32, 1
      %p55 = por %p53, %p54
      %p57 = scmp.ne.s32.totalorder %s40, %s56
      %p58 = scmp.eq.s32.totalorder %s32, 0
      %p59 = por %p57, %p58
      %s60 = ssub.s32 %s26, %s33
      %p61 = scmp.eq.s32.totalorder %s60, 0
      %s63 = sadd.s32 %s62, 1
      %s64 = scalar_select %p61, %s62, %s63
      %p67 = pneg %p61
      %p68 = scmp.eq.s32.totalorder %s26, 1
      %p69 = por %p67, %p68
      %p70 = scmp.ne.s32.totalorder %s62, %s65
      %p71 = scmp.eq.s32.totalorder %s26, 0
      %p72 = por %p70, %p71
      %p73 = scmp.ne.s32.totalorder %s62, %s65
      %p74 = scmp.eq.s32.totalorder %s31, 1
      %p75 = por %p73, %p74
      %p76 = scmp.ne.s32.totalorder %s65, %s66
      %p77 = scmp.eq.s32.totalorder %s31, 0
      %p78 = por %p76, %p77
      %p79 = scmp.ne.s32.totalorder %s65, %s66
      %p80 = scmp.eq.s32.totalorder %s32, 1
      %p81 = por %p79, %p80
      %p83 = scmp.ne.s32.totalorder %s66, %s82
      %p84 = scmp.eq.s32.totalorder %s32, 0
      %p85 = por %p83, %p84
      %s87 = sadd.s32 %s86, 1
      %p90 = scmp.eq.s32.totalorder %s26, 1
      %p91 = scmp.ne.s32.totalorder %s86, %s88
      %p92 = scmp.eq.s32.totalorder %s26, 0
      %p93 = por %p91, %p92
      %p94 = scmp.ne.s32.totalorder %s86, %s88
      %p95 = scmp.eq.s32.totalorder %s31, 1
      %p96 = por %p94, %p95
      %p97 = scmp.ne.s32.totalorder %s88, %s89
      %p98 = scmp.eq.s32.totalorder %s31, 0
      %p99 = por %p97, %p98
      %p100 = scmp.ne.s32.totalorder %s88, %s89
      %p101 = scmp.eq.s32.totalorder %s32, 1
      %p102 = por %p100, %p101
      %p104 = scmp.ne.s32.totalorder %s89, %s103
      %p105 = scmp.eq.s32.totalorder %s32, 0
      %p106 = por %p104, %p105
      %s108 = sadd.s32 %s107, 1
      %p111 = scmp.eq.s32.totalorder %s26, 1
      %p112 = scmp.ne.s32.totalorder %s107, %s109
      %p113 = scmp.eq.s32.totalorder %s26, 0
      %p114 = por %p112, %p113
      %p115 = scmp.ne.s32.totalorder %s107, %s109
      %p116 = scmp.eq.s32.totalorder %s31, 1
      %p117 = por %p115, %p116
      %p118 = scmp.ne.s32.totalorder %s109, %s110
      %p119 = scmp.eq.s32.totalorder %s31, 0
      %p120 = por %p118, %p119
      %p121 = scmp.ne.s32.totalorder %s109, %s110
      %p122 = scmp.eq.s32.totalorder %s32, 1
      %p123 = por %p121, %p122
      %p125 = scmp.ne.s32.totalorder %s110, %s124
      %p126 = scmp.eq.s32.totalorder %s32, 0
      %p127 = por %p125, %p126
      %s129 = sadd.s32 %s128, 1
      %p132 = scmp.eq.s32.totalorder %s26, 1
      %p133 = scmp.ne.s32.totalorder %s128, %s130
      %p134 = scmp.eq.s32.totalorder %s26, 0
      %p135 = por %p133, %p134
      %p136 = scmp.ne.s32.totalorder %s128, %s130
      %p137 = scmp.eq.s32.totalorder %s31, 1
      %p138 = por %p136, %p137
      %p139 = scmp.ne.s32.totalorder %s130, %s131
      %p140 = scmp.eq.s32.totalorder %s31, 0
      %p141 = por %p139, %p140
      %p142 = scmp.ne.s32.totalorder %s130, %s131
      %p143 = scmp.eq.s32.totalorder %s32, 1
      %p144 = por %p142, %p143
      %p146 = scmp.ne.s32.totalorder %s131, %s145
      %p147 = scmp.eq.s32.totalorder %s32, 0
      %p148 = por %p146, %p147
      %s150 = sadd.s32 %s149, 1
      %p153 = scmp.eq.s32.totalorder %s26, 1
      %p154 = scmp.ne.s32.totalorder %s149, %s151
      %p155 = scmp.eq.s32.totalorder %s26, 0
      %p156 = por %p154, %p155
      %p157 = scmp.ne.s32.totalorder %s149, %s151
      %p158 = scmp.eq.s32.totalorder %s31, 1
      %p159 = por %p157, %p158
      %p160 = scmp.ne.s32.totalorder %s151, %s152
      %p161 = scmp.eq.s32.totalorder %s31, 0
      %p162 = por %p160, %p161
      %p163 = scmp.ne.s32.totalorder %s151, %s152
      %p164 = scmp.eq.s32.totalorder %s32, 1
      %p165 = por %p163, %p164
      %p167 = scmp.ne.s32.totalorder %s152, %s166
      %p168 = scmp.eq.s32.totalorder %s32, 0
      %p169 = por %p167, %p168
      %s171 = sadd.s32 %s170, 1
      %p174 = scmp.eq.s32.totalorder %s26, 1
      %p175 = scmp.ne.s32.totalorder %s170, %s172
      %p176 = scmp.eq.s32.totalorder %s26, 0
      %p177 = por %p175, %p176
      %p178 = scmp.ne.s32.totalorder %s170, %s172
      %p179 = scmp.eq.s32.totalorder %s31, 1
      %p180 = por %p178, %p179
      %p181 = scmp.ne.s32.totalorder %s172, %s173
      %p182 = scmp.eq.s32.totalorder %s31, 0
      %p183 = por %p181, %p182
      %p184 = scmp.ne.s32.totalorder %s172, %s173
      %p185 = scmp.eq.s32.totalorder %s32, 1
      %p186 = por %p184, %p185
      %p188 = scmp.ne.s32.totalorder %s173, %s187
      %p189 = scmp.eq.s32.totalorder %s32, 0
      %p190 = por %p188, %p189
      %s192 = sadd.s32 %s191, 1
      %p195 = scmp.eq.s32.totalorder %s26, 1
      %p196 = scmp.ne.s32.totalorder %s191, %s193
      %p197 = scmp.eq.s32.totalorder %s26, 0
      %p198 = por %p196, %p197
      %p199 = scmp.ne.s32.totalorder %s191, %s193
      %p200 = scmp.eq.s32.totalorder %s31, 1
      %p201 = por %p199, %p200
      %p202 = scmp.ne.s32.totalorder %s193, %s194
      %p203 = scmp.eq.s32.totalorder %s31, 0
      %p204 = por %p202, %p203
      %p205 = scmp.ne.s32.totalorder %s193, %s194
      %p206 = scmp.eq.s32.totalorder %s32, 1
      %p207 = por %p205, %p206
      %p209 = scmp.ne.s32.totalorder %s194, %s208
      %p210 = scmp.eq.s32.totalorder %s32, 0
      %p211 = por %p209, %p210
      %s212 = ssub.s32 %s26, %s33
      %p213 = scmp.eq.s32.totalorder %s212, 0
      %s215 = sadd.s32 %s214, 1
      %s216 = scalar_select %p213, %s214, %s215
      %p219 = pneg %p213
      %p220 = scmp.eq.s32.totalorder %s26, 1
      %p221 = por %p219, %p220
      %p222 = scmp.ne.s32.totalorder %s214, %s217
      %p223 = scmp.eq.s32.totalorder %s26, 0
      %p224 = por %p222, %p223
      %p225 = scmp.ne.s32.totalorder %s214, %s217
      %p226 = scmp.eq.s32.totalorder %s31, 1
      %p227 = por %p225, %p226
      %p228 = scmp.ne.s32.totalorder %s217, %s218
      %p229 = scmp.eq.s32.totalorder %s31, 0
      %p230 = por %p228, %p229
      %p231 = scmp.ne.s32.totalorder %s217, %s218
      %p232 = scmp.eq.s32.totalorder %s32, 1
      %p233 = por %p231, %p232
      %p235 = scmp.ne.s32.totalorder %s218, %s234
      %p236 = scmp.eq.s32.totalorder %s32, 0
      %p237 = por %p235, %p236
      %s238 = ssub.s32 %s26, %s33
      %p239 = scmp.eq.s32.totalorder %s238, 0
      %s241 = sadd.s32 %s240, 1
      %s242 = scalar_select %p239, %s240, %s241
      %p245 = pneg %p239
      %p246 = scmp.eq.s32.totalorder %s26, 1
      %p247 = por %p245, %p246
      %p248 = scmp.ne.s32.totalorder %s240, %s243
      %p249 = scmp.eq.s32.totalorder %s26, 0
      %p250 = por %p248, %p249
      %p251 = scmp.ne.s32.totalorder %s240, %s243
      %p252 = scmp.eq.s32.totalorder %s31, 1
      %p253 = por %p251, %p252
      %p254 = scmp.ne.s32.totalorder %s243, %s244
      %p255 = scmp.eq.s32.totalorder %s31, 0
      %p256 = por %p254, %p255
      %p257 = scmp.ne.s32.totalorder %s243, %s244
      %p258 = scmp.eq.s32.totalorder %s32, 1
      %p259 = por %p257, %p258
      %p261 = scmp.ne.s32.totalorder %s244, %s260
      %p262 = scmp.eq.s32.totalorder %s32, 0
      %p263 = por %p261, %p262
      %p264 = scmp.le.s32.totalorder 1, %s26
      %p265 = scmp.lt.s32.totalorder %s26, 3
      %p266 = pnand %p264, %p265
      %p267 = pneg %p266
      // Predicated region
      $region9: #{tpu_custom_call.1} parent=5 // pred_check
        _
      $region10: #{tpu_custom_call.1} parent=5 // pred_check_branch
        %269 = sbr.rel (%p266) target = $region12
      $region11: #{tpu_custom_call.1} parent=5 // pred_region
        %s270 = ssub.s32 %s26, 1
        // Predicated region
        $region13: #{tpu_custom_call.1} parent=11 // pred_check
          %p271 = pneg %p99
        $region14: #{tpu_custom_call.1} parent=11 // pred_check_branch
          %273 = sbr.rel (%p271) target = $region16
        $region15: #{tpu_custom_call.1} parent=11 // pred_region
          %275 = vsyncadd [#allocation6], 0
          %s276 = sshll.u32 %s2, 4
          %s277 = int_to_ptr.hbm [resolvable:$true] %s276
          %s278 = sshll.u32 [#allocation5], 4
          %s279 = int_to_ptr.vmem [resolvable:$true] %s278
          %284 = dma.hbm_to_vmem [thread:$0]  %s277, 256, %s279, [#allocation6], 128, 128, 8
        $region16: #{tpu_custom_call.1} parent=11 // pred_fallthru
          _
        // Predicated region
        $region17: #{tpu_custom_call.1} parent=11 // pred_check
          %p285 = pneg %p120
        $region18: #{tpu_custom_call.1} parent=11 // pred_check_branch
          %287 = sbr.rel (%p285) target = $region20
        $region19: #{tpu_custom_call.1} parent=11 // pred_region
          _
        $region20: #{tpu_custom_call.1} parent=11 // pred_fallthru
          _
        // Predicated region
        $region21: #{tpu_custom_call.1} parent=11 // pred_check
          %p288 = pneg %p141
        $region22: #{tpu_custom_call.1} parent=11 // pred_check_branch
          %290 = sbr.rel (%p288) target = $region24
        $region23: #{tpu_custom_call.1} parent=11 // pred_region
          _
        $region24: #{tpu_custom_call.1} parent=11 // pred_fallthru
          _
        // Predicated region
        $region25: #{tpu_custom_call.1} parent=11 // pred_check
          %p291 = pneg %p162
        $region26: #{tpu_custom_call.1} parent=11 // pred_check_branch
          %293 = sbr.rel (%p291) target = $region28
        $region27: #{tpu_custom_call.1} parent=11 // pred_region
          %295 = vsyncadd [#allocation6], 0
          %s296 = sshll.u32 %s5, 4
          %s297 = int_to_ptr.hbm [resolvable:$true] %s296
          %s298 = sshll.u32 [#allocation7], 4
          %s299 = int_to_ptr.vmem [resolvable:$true] %s298
          %304 = dma.hbm_to_vmem [thread:$0]  %s297, 512, %s299, [#allocation6], 128, 128, 8
        $region28: #{tpu_custom_call.1} parent=11 // pred_fallthru
          _
        // Predicated region
        $region29: #{tpu_custom_call.1} parent=11 // pred_check
          %p305 = pneg %p183
        $region30: #{tpu_custom_call.1} parent=11 // pred_check_branch
          %307 = sbr.rel (%p305) target = $region32
        $region31: #{tpu_custom_call.1} parent=11 // pred_region
          _
        $region32: #{tpu_custom_call.1} parent=11 // pred_fallthru
          _
        // Predicated region
        $region33: #{tpu_custom_call.1} parent=11 // pred_check
          %p308 = pneg %p204
        $region34: #{tpu_custom_call.1} parent=11 // pred_check_branch
          %310 = sbr.rel (%p308) target = $region36
        $region35: #{tpu_custom_call.1} parent=11 // pred_region
          _
        $region36: #{tpu_custom_call.1} parent=11 // pred_fallthru
          _
      $region12: #{tpu_custom_call.1} parent=5 // pred_fallthru
        _
      %p311 = scmp.lt.s32.totalorder %s26, 2
      // Predicated region
      $region37: #{tpu_custom_call.1} parent=5 // pred_check
        %p312 = pneg %p311
      $region38: #{tpu_custom_call.1} parent=5 // pred_check_branch
        %314 = sbr.rel (%p312) target = $region40
      $region39: #{tpu_custom_call.1} parent=5 // pred_region
        // Predicated region
        $region41: #{tpu_custom_call.1} parent=39 // pred_check
          %p315 = pneg %p46
        $region42: #{tpu_custom_call.1} parent=39 // pred_check_branch
          %317 = sbr.rel (%p315) target = $region44
        $region43: #{tpu_custom_call.1} parent=39 // pred_region
          %p318 = scmp.lt.s32.totalorder %s26, 1
          %s319 = scalar_select %p318, %s26, 1
          %s320 = smul.addr %s319, 8
          %s321 = scalar_lea.vmem %s0, %s320
        $region44: #{tpu_custom_call.1} parent=39 // pred_fallthru
          _
        // Predicated region
        $region45: #{tpu_custom_call.1} parent=39 // pred_check
          %p322 = pneg %p72
        $region46: #{tpu_custom_call.1} parent=39 // pred_check_branch
          %324 = sbr.rel (%p322) target = $region48
        $region47: #{tpu_custom_call.1} parent=39 // pred_region
          %s325 = sand.u32 %s62, 1
          %s326 = scalar_lea.sflag [#allocation3], %s325
          %s327 = sand.u32 %s62, 1
          %s328 = smul.addr %s327, 8
          %s329 = scalar_lea.vmem [#allocation2], %s328
          %331 = vsyncadd %s326, 0
          %s332 = smul.addr %s26, 8
          %s333 = scalar_lea.hbm %s1, %s332
          %s335 = sshll.u32 %s333, 4
          %s336 = int_to_ptr.hbm [resolvable:$true] %s335
          %s337 = sshll.u32 %s329, 4
          %s338 = int_to_ptr.vmem [resolvable:$true] %s337
          %340 = dma.hbm_to_vmem [thread:$0]  %s336, 128, %s338, %s326
        $region48: #{tpu_custom_call.1} parent=39 // pred_fallthru
          _
      $region40: #{tpu_custom_call.1} parent=5 // pred_fallthru
        _
      %p341 = scmp.le.s32.totalorder 1, %s26
      %p342 = scmp.lt.s32.totalorder %s26, 3
      %p343 = pnand %p341, %p342
      %p344 = pneg %p343
      // Predicated region
      $region49: #{tpu_custom_call.1} parent=5 // pred_check
        _
      $region50: #{tpu_custom_call.1} parent=5 // pred_check_branch
        %346 = sbr.rel (%p343) target = $region52
      $region51: #{tpu_custom_call.1} parent=5 // pred_region
        %s347 = ssub.s32 %s26, 1
        %s348 = sand.u32 %s65, 1
        %s349 = scalar_lea.sflag [#allocation3], %s348
        %s350 = sand.u32 %s65, 1
        %s351 = smul.addr %s350, 8
        %s352 = scalar_lea.vmem [#allocation2], %s351
        // Predicated region
        $region53: #{tpu_custom_call.1} parent=51 // pred_check
          %p353 = pneg %p78
        $region54: #{tpu_custom_call.1} parent=51 // pred_check_branch
          %355 = sbr.rel (%p353) target = $region56
        $region55: #{tpu_custom_call.1} parent=51 // pred_region
          %357 = dma.done %s349, 128
        $region56: #{tpu_custom_call.1} parent=51 // pred_fallthru
          _
        // Predicated region
        $region57: #{tpu_custom_call.1} parent=51 // pred_check
          %p358 = pneg %p99
        $region58: #{tpu_custom_call.1} parent=51 // pred_check_branch
          %360 = sbr.rel (%p358) target = $region60
        $region59: #{tpu_custom_call.1} parent=51 // pred_region
          %362 = dma.done [#allocation6], 256
        $region60: #{tpu_custom_call.1} parent=51 // pred_fallthru
          _
        // Predicated region
        $region61: #{tpu_custom_call.1} parent=51 // pred_check
          %p363 = pneg %p162
        $region62: #{tpu_custom_call.1} parent=51 // pred_check_branch
          %365 = sbr.rel (%p363) target = $region64
        $region63: #{tpu_custom_call.1} parent=51 // pred_region
          %367 = dma.done [#allocation6], 512
        $region64: #{tpu_custom_call.1} parent=51 // pred_fallthru
          _
        %p368 = scmp.lt.s32.totalorder %s31, 1
        %s369 = scalar_select %p368, %s31, 1
        %s370 = smul.addr %s369, 8
        %s371 = scalar_lea.vmem %s0, %s370
        %p372 = pneg %p52
        %p373 = pneg %p49
        %s374 = sand.u32 %s65, 1
        %s375 = scalar_lea.sflag [#allocation3], %s374
        %s376 = sand.u32 %s65, 1
        %s377 = smul.addr %s376, 8
        %s378 = scalar_lea.vmem [#allocation2], %s377
        %p379 = pneg %p78
        %p380 = pneg %p75
        %p381 = pneg %p99
        %p382 = pneg %p96
        %p383 = pneg %p120
        %p384 = pneg %p117
        %p385 = pneg %p141
        %p386 = pneg %p138
        %p387 = pneg %p162
        %p388 = pneg %p159
        %p389 = pneg %p183
        %p390 = pneg %p180
        %p391 = pneg %p204
        %p392 = pneg %p201
        %p393 = pneg %p230
        %p394 = pneg %p227
        %s395 = sand.u32 %s217, 1
        %s396 = scalar_lea.sflag [#allocation4], %s395
        %s397 = sand.u32 %s217, 1
        %s398 = smul.addr %s397, 8
        %s399 = scalar_lea.vmem [#allocation8], %s398
        %p400 = pneg %p256
        %p401 = pneg %p253
        %s402 = sand.u32 %s243, 1
        %s403 = scalar_lea.sflag [#allocation10], %s402
        %s404 = sand.u32 %s243, 1
        %s405 = scalar_lea.vmem [#allocation9], %s404
        %p406 = scmp.lt.s32.totalorder %s31, 1
        %s407 = scalar_select %p406, %s31, 1
        %s408 = smul.addr %s407, 8
        %s409 = scalar_lea.vmem %s0, %s408
        %v410 = vld [vmem:[%s409] sm:$0xff]
        %v411 = vld [vmem:[%s352] sm:$0xff]
        %v412 = vld [vmem:[#allocation5] sm:$0xff]
        %v413 = vld [vmem:[#allocation5 + $0x8] sm:$0xff]
        %v414 = vld [vmem:[%s3] sm:$0xff]
        %v415 = vld [vmem:[%s3 + $0x8] sm:$0xff]
        %v416 = vld [vmem:[%s3 + $0x10] sm:$0xff]
        %v417 = vld [vmem:[%s3 + $0x18] sm:$0xff]
        %vm418 = vcmask 261120
        %v420 = vsel %vm418, %v411, 0
        %422 = vmatpush.msra.mxu0 0.0
        %423 = vmatpush.msra.mxu0 0.0
        %424 = vmatpush.msra.mxu0 0.0
        %425 = vmatpush.msra.mxu0 0.0
        %426 = vmatpush.msra.mxu0 0.0
        %427 = vmatpush.msra.mxu0 0.0
        %428 = vmatpush.msra.mxu0 0.0
        %429 = vmatpush.msra.mxu0 0.0
        %430 = vmatpush.msra.mxu0 0.0
        %431 = vmatpush.msra.mxu0 0.0
        %432 = vmatpush.msra.mxu0 0.0
        %433 = vmatpush.msra.mxu0 0.0
        %434 = vmatpush.msra.mxu0 %v417
        %435 = vmatpush.msra.mxu0 %v416
        %436 = vmatpush.msra.mxu0 %v415
        %437 = vmatpush.msra.mxu0 %v414
        %438 = vmatmul.f32.gmra.mxu0 %v420
        %v439 = vpop.f32.mrf.mxu0
        %v440 = vadd.f32 0.0, %v439
        %441 = vdwg.mxu0
        %vm442 = vcmask 130048
        %v444 = vsel %vm442, %v410, 0
        %446 = vmatpush.msra.mxu0 0.0
        %447 = vmatpush.msra.mxu0 0.0
        %448 = vmatpush.msra.mxu0 0.0
        %449 = vmatpush.msra.mxu0 0.0
        %450 = vmatpush.msra.mxu0 0.0
        %451 = vmatpush.msra.mxu0 0.0
        %452 = vmatpush.msra.mxu0 0.0
        %453 = vmatpush.msra.mxu0 0.0
        %454 = vmatpush.msra.mxu0 0.0
        %455 = vmatpush.msra.mxu0 0.0
        %456 = vmatpush.msra.mxu0 0.0
        %457 = vmatpush.msra.mxu0 0.0
        %458 = vmatpush.msra.mxu0 0.0
        %459 = vmatpush.msra.mxu0 0.0
        %460 = vmatpush.msra.mxu0 %v413
        %461 = vmatpush.msra.mxu0 %v412
        %462 = vmatmul.f32.gmra.mxu0 %v444
        %v463 = vpop.f32.mrf.mxu0
        %v464 = vadd.f32 %v440, %v463
        %465 = vdwg.mxu0
        %v466 = vld [vmem:[%s4] sm:$0x1]
        %v468 = vperm.slane %v466, 0
        %v470 = vadd.f32 %v464, %v468
        %v471 = vxor.u32 %v470, 2147483648
        %v472 = vmul.f32 %v471, 1.442695
        %v473 = vpow.pop %v472
        %v474 = vadd.f32 %v473, 1.0
        %v475 = vrcp.pop %v474
        %v476 = vmul.f32 %v474, %v475
        %v477 = vsub.f32 1.0, %v476
        %v478 = vmul.f32 %v475, %v477
        %v479 = vadd.f32 %v475, %v478
        %vm480 = vweird.f32 %v474
        %vm481 = vweird.f32 %v475
        %vm482 = vmor %vm480, %vm481
        %v483 = vsel %vm482, %v475, %v479
        %v484 = vand.u32 2147483647, %v474
        %vm485 = vcmp.eq.f32.partialorder %v484, 8.507059e+37
        %v486 = vand.u32 %v474, 2147483648
        %v487 = vor.u32 1.1754944e-38, %v486
        %v488 = vsel %vm485, %v487, %v483
        %v489 = vmul.f32 1.0, %v488
        %v490 = vmul.f32 %v489, %v411
        %v491 = vld [vmem:[#allocation7] sm:$0xff]
        %v492 = vld [vmem:[#allocation7 + $0x8] sm:$0xff]
        %v493 = vld [vmem:[#allocation7 + $0x10] sm:$0xff]
        %v494 = vld [vmem:[#allocation7 + $0x18] sm:$0xff]
        %v496 = vsel %vm418, %v490, 0
        %498 = vmatpush.msra.mxu0 0.0
        %499 = vmatpush.msra.mxu0 0.0
        %500 = vmatpush.msra.mxu0 0.0
        %501 = vmatpush.msra.mxu0 0.0
        %502 = vmatpush.msra.mxu0 0.0
        %503 = vmatpush.msra.mxu0 0.0
        %504 = vmatpush.msra.mxu0 0.0
        %505 = vmatpush.msra.mxu0 0.0
        %506 = vmatpush.msra.mxu0 0.0
        %507 = vmatpush.msra.mxu0 0.0
        %508 = vmatpush.msra.mxu0 0.0
        %509 = vmatpush.msra.mxu0 0.0
        %510 = vmatpush.msra.mxu0 %v494
        %511 = vmatpush.msra.mxu0 %v493
        %512 = vmatpush.msra.mxu0 %v492
        %513 = vmatpush.msra.mxu0 %v491
        %514 = vmatmul.f32.gmra.mxu0 %v496
        %v515 = vpop.f32.mrf.mxu0
        %v516 = vadd.f32 0.0, %v515
        %517 = vdwg.mxu0
        %519 = vrot.lane.b32.xlu0 %v516, 32
        %v520 = vpop.permute.xlu0 %519
        %v522 = vadd.f32 %v470, %v520
        %v523 = vtanh.pop %v522
        %v524 = vsub.f32 1.0, %v489
        %v525 = vmul.f32 %v524, %v411
        %527 = vrot.lane.b32.xlu0 %v523, 96
        %v528 = vpop.permute.xlu0 %527
        %v530 = vmul.f32 %v489, %v528
        %v531 = vadd.f32 %v525, %v530
        %532 = vst.msk [vmem:[%s399] sm:$0xff] %vm418, %v531
        %v533 = vmax.f32 %v531, 0.0
        %v534 = vld [vmem:[%s6] sm:$0xff]
        %v535 = vld [vmem:[%s6 + $0x8] sm:$0xff]
        %v536 = vld [vmem:[%s6 + $0x10] sm:$0xff]
        %v537 = vld [vmem:[%s6 + $0x18] sm:$0xff]
        %v538 = vld [vmem:[%s7] sm:$0x1]
        %v540 = vrot.slane %v533, 7
        %v541 = vsel %vm418, %v540, 0
        %543 = vmatpush.msra.mxu0 0.0
        %544 = vmatpush.msra.mxu0 0.0
        %545 = vmatpush.msra.mxu0 0.0
        %546 = vmatpush.msra.mxu0 0.0
        %547 = vmatpush.msra.mxu0 0.0
        %548 = vmatpush.msra.mxu0 0.0
        %549 = vmatpush.msra.mxu0 0.0
        %550 = vmatpush.msra.mxu0 0.0
        %551 = vmatpush.msra.mxu0 0.0
        %552 = vmatpush.msra.mxu0 0.0
        %553 = vmatpush.msra.mxu0 0.0
        %554 = vmatpush.msra.mxu0 0.0
        %555 = vmatpush.msra.mxu0 %v537
        %556 = vmatpush.msra.mxu0 %v536
        %557 = vmatpush.msra.mxu0 %v535
        %558 = vmatpush.msra.mxu0 %v534
        %559 = vmatmul.f32.gmra.mxu0 %v541
        %v560 = vpop.f32.mrf.mxu0
        %v561 = vadd.f32 %v538, %v560
        %562 = vdwg.mxu0
        %vm563 = vcmask 73728
        %v564 = vsel %vm563, %v561, -inf
        %565 = vmax.xlane.f32.xlu0 %v564
        %v566 = vpop.xlane.xlu0 %565
        %v567 = vsub.f32 %v561, %v566
        %v568 = vmul.f32 %v567, 1.442695
        %v569 = vpow.pop %v568
        %v570 = vsel %vm563, %v569, 0.0
        %571 = vadd.xlane.f32.xlu0 %v570
        %v572 = vpop.xlane.xlu0 %571
        %v573 = vlog2.pop %v572
        %v574 = vmul.f32 %v573, 0.6931472
        %v575 = vsub.f32 %v567, %v574
        %576 = vst.msk [vmem:[%s405] sm:$0x1] %vm563, %v575
        %s577 = sand.u32 %s217, 1
        %s578 = scalar_lea.sflag [#allocation4], %s577
        %s579 = sand.u32 %s217, 1
        %s580 = smul.addr %s579, 8
        %s581 = scalar_lea.vmem [#allocation8], %s580
        %s582 = sand.u32 %s243, 1
        %s583 = scalar_lea.sflag [#allocation10], %s582
        %s584 = sand.u32 %s243, 1
        %s585 = scalar_lea.vmem [#allocation9], %s584
        // Predicated region
        $region65: #{tpu_custom_call.1} parent=51 // pred_check
          %p586 = pneg %p227
        $region66: #{tpu_custom_call.1} parent=51 // pred_check_branch
          %588 = sbr.rel (%p586) target = $region68
        $region67: #{tpu_custom_call.1} parent=51 // pred_region
          %590 = vsyncadd %s578, 0
          %s591 = smul.addr %s31, 8
          %s592 = scalar_lea.hbm %s8, %s591
          %s594 = sshll.u32 %s581, 4
          %s595 = int_to_ptr.vmem [resolvable:$true] %s594
          %s596 = sshll.u32 %s592, 4
          %s597 = int_to_ptr.hbm [resolvable:$true] %s596
          %599 = dma.vmem_to_hbm [thread:$0]  %s595, 128, %s597, %s578
        $region68: #{tpu_custom_call.1} parent=51 // pred_fallthru
          _
        // Predicated region
        $region69: #{tpu_custom_call.1} parent=51 // pred_check
          %p600 = pneg %p253
        $region70: #{tpu_custom_call.1} parent=51 // pred_check_branch
          %602 = sbr.rel (%p600) target = $region72
        $region71: #{tpu_custom_call.1} parent=51 // pred_region
          %604 = vsyncadd %s583, 0
          %s605 = scalar_lea.hbm %s9, %s31
          %s607 = sshll.u32 %s585, 4
          %s608 = int_to_ptr.vmem [resolvable:$true] %s607
          %s609 = sshll.u32 %s605, 4
          %s610 = int_to_ptr.hbm [resolvable:$true] %s609
          %612 = dma.vmem_to_hbm [thread:$0]  %s608, 16, %s610, %s583
        $region72: #{tpu_custom_call.1} parent=51 // pred_fallthru
          _
      $region52: #{tpu_custom_call.1} parent=5 // pred_fallthru
        _
      %p613 = scmp.le.s32.totalorder 2, %s26
      // Predicated region
      $region73: #{tpu_custom_call.1} parent=5 // pred_check
        %p614 = pneg %p613
      $region74: #{tpu_custom_call.1} parent=5 // pred_check_branch
        %616 = sbr.rel (%p614) target = $region76
      $region75: #{tpu_custom_call.1} parent=5 // pred_region
        %s617 = ssub.s32 %s26, 2
        // Predicated region
        $region77: #{tpu_custom_call.1} parent=75 // pred_check
          %p618 = pneg %p233
        $region78: #{tpu_custom_call.1} parent=75 // pred_check_branch
          %620 = sbr.rel (%p618) target = $region80
        $region79: #{tpu_custom_call.1} parent=75 // pred_region
          %s621 = sand.u32 %s218, 1
          %s622 = scalar_lea.sflag [#allocation4], %s621
          %s623 = sand.u32 %s218, 1
          %s624 = smul.addr %s623, 8
          %s625 = scalar_lea.vmem [#allocation8], %s624
          %627 = dma.done %s622, 128
        $region80: #{tpu_custom_call.1} parent=75 // pred_fallthru
          _
        // Predicated region
        $region81: #{tpu_custom_call.1} parent=75 // pred_check
          %p628 = pneg %p259
        $region82: #{tpu_custom_call.1} parent=75 // pred_check_branch
          %630 = sbr.rel (%p628) target = $region84
        $region83: #{tpu_custom_call.1} parent=75 // pred_region
          %s631 = sand.u32 %s244, 1
          %s632 = scalar_lea.sflag [#allocation10], %s631
          %s633 = sand.u32 %s244, 1
          %s634 = scalar_lea.vmem [#allocation9], %s633
          %636 = dma.done %s632, 16
        $region84: #{tpu_custom_call.1} parent=75 // pred_fallthru
          _
      $region76: #{tpu_custom_call.1} parent=5 // pred_fallthru
        _
    $region6: #{tpu_custom_call.1} parent=1 // loop_footer
      %s30 = sadd.s32 1, %s26
    $region7: #{tpu_custom_call.1} parent=1 // loop_footer_branch
      %25 = sbr.rel target = $region3
    $region8: #{tpu_custom_call.1} parent=1 // loop_exit
      _
    %637 = vsyncpa [#allocation3], 1
    %s638 = scalar_lea.sflag [#allocation3], 1
    %639 = vsyncpa %s638, 1
    %640 = vsyncpa [#allocation6], 1
    %641 = vsyncpa [#allocation4], 1
    %s642 = scalar_lea.sflag [#allocation4], 1
    %643 = vsyncpa %s642, 1
    %644 = vsyncpa [#allocation10], 1
    %s645 = scalar_lea.sflag [#allocation10], 1
    %646 = vsyncpa %s645, 1

</llo_original>
